<compile_context>
chip_gen: v6e
topology: v6e:2x2x1
jax: 0.10.0
libtpu: 0.0.40
codegen_flags: <defaults>
</compile_context>

<pallas_src>
import functools

import jax
import jax.numpy as jnp
from jax.experimental import pallas as pl
from jax.experimental.pallas import tpu as pltpu

LANE = 128  # TPU lane width; hidden feature dims are padded to this.


def _round_up(n: int, m: int) -> int:
    return ((n + m - 1) // m) * m


# --------------------------------------------------------------------------- #
# Kernel
# --------------------------------------------------------------------------- #
def dqn_kernel(x_ref, w1_ref, w2_ref, w3_ref, bias_ref, o_ref, *, n_actions):
    # Input arrives at its natural f32 width; cast to bf16 for the MXU here so
    # the wrapper never pays an extra HBM pad/cast pass.
    x = x_ref[...].astype(jnp.bfloat16)
    b = bias_ref[...]  # (3, hidden_pad) f32

    # fc1 + ReLU  (bf16 MXU operands, f32 accumulate; f32 epilogue is v5e-safe)
    h1 = jnp.dot(x, w1_ref[...], preferred_element_type=jnp.float32)
    h1 = jnp.maximum(h1 + b[0:1, :], 0.0).astype(jnp.bfloat16)

    # fc2 + ReLU
    h2 = jnp.dot(h1, w2_ref[...], preferred_element_type=jnp.float32)
    h2 = jnp.maximum(h2 + b[1:2, :], 0.0).astype(jnp.bfloat16)

    # fc3 (raw Q-values, no activation) -> narrow n_actions-wide f32 store
    o_ref[...] = (
        jnp.dot(h2, w3_ref[...], preferred_element_type=jnp.float32)
        + b[2:3, :n_actions]
    )


# --------------------------------------------------------------------------- #
# Params: PyTorch-Linear-like init (f32, exact module shapes) + one-time
# layout prep for the kernel.
# --------------------------------------------------------------------------- #
def init_params(key, input_dim, fc1_dims, fc2_dims, n_actions):
    ks = jax.random.split(key, 6)

    def linear(kw, kb, fan_in, fan_out):
        bound = 1.0 / jnp.sqrt(fan_in)
        w = jax.random.uniform(kw, (fan_in, fan_out), jnp.float32, -bound, bound)
        b = jax.random.uniform(kb, (1, fan_out), jnp.float32, -bound, bound)
        return w, b

    w1, b1 = linear(ks[0], ks[1], input_dim, fc1_dims)
    w2, b2 = linear(ks[2], ks[3], fc1_dims, fc2_dims)
    w3, b3 = linear(ks[4], ks[5], fc2_dims, n_actions)
    return {"w1": w1, "b1": b1, "w2": w2, "b2": b2, "w3": w3, "b3": b3}


def prepare_params(params):
    """One-time layout prep:

    * Hidden feature dims are zero-padded to 128 lanes (full-vreg MXU tiles);
      the input dim and the n_actions output dim keep their natural widths.
    * Weights -> bf16 (MXU operands); biases stay f32 and are stacked into a
      single (3, hidden_pad) operand to cut pallas_call operand count.
    Zero padding keeps the math exact (padded activation lanes stay 0).
    """
    d_in, fc1 = params["w1"].shape
    fc2 = params["w2"].shape[1]
    n_actions = params["w3"].shape[1]
    hp = _round_up(max(fc1, fc2, n_actions), LANE)

    w1 = jnp.pad(params["w1"], ((0, 0), (0, hp - fc1))).astype(jnp.bfloat16)
    w2 = jnp.pad(params["w2"], ((0, hp - fc1), (0, hp - fc2))).astype(jnp.bfloat16)
    w3 = jnp.pad(params["w3"], ((0, hp - fc2), (0, 0))).astype(jnp.bfloat16)
    bias = jnp.concatenate(
        [
            jnp.pad(params["b1"], ((0, 0), (0, hp - fc1))),
            jnp.pad(params["b2"], ((0, 0), (0, hp - fc2))),
            jnp.pad(params["b3"], ((0, 0), (0, hp - n_actions))),
        ],
        axis=0,
    ).astype(jnp.float32)
    return {"w1": w1, "w2": w2, "w3": w3, "bias": bias}


# --------------------------------------------------------------------------- #
# Wrapper
# --------------------------------------------------------------------------- #
def dqn_forward(state, prepared, tb=1024):
    """state: [B, D_in] f32 (natural width). prepared: output of prepare_params()."""
    w1, w2, w3, bias = prepared["w1"], prepared["w2"], prepared["w3"], prepared["bias"]
    B, d_in = state.shape
    n_actions = w3.shape[1]

    kernel = functools.partial(dqn_kernel, n_actions=n_actions)
    out_shape = jax.ShapeDtypeStruct((B, n_actions), jnp.float32)

    # Advisory cost for XLA's scheduler (padded per-call work).
    flops = 2 * B * (
        w1.shape[0] * w1.shape[1]
        + w2.shape[0] * w2.shape[1]
        + w3.shape[0] * w3.shape[1]
    )
    bytes_accessed = (
        state.size * state.dtype.itemsize
        + w1.size * w1.dtype.itemsize
        + w2.size * w2.dtype.itemsize
        + w3.size * w3.dtype.itemsize
        + bias.size * bias.dtype.itemsize
        + B * n_actions * 4
    )
    cost = pl.CostEstimate(flops=flops, transcendentals=0, bytes_accessed=bytes_accessed)

    if B <= tb:
        # Grid-less single invocation: the whole problem is a few hundred KiB,
        # far under VMEM on v5e/v6e (128 MiB) and v7x (64 MiB). Every operand
        # is a whole-array VMEM block; no pipeline prologue/epilogue.
        return pl.pallas_call(
            kernel,
            out_shape=out_shape,
            cost_estimate=cost,
        )(state, w1, w2, w3, bias)

    # Batch-tiled path: activation tiles advance along the (parallel) batch
    # grid axis; weights/bias are pinned at block (0, 0) so they are fetched
    # once and stay VMEM-resident. Ragged last block is masked by Pallas.
    grid = (pl.cdiv(B, tb),)
    pinned = lambda arr: pl.BlockSpec(arr.shape, lambda i: (0, 0))
    return pl.pallas_call(
        kernel,
        out_shape=out_shape,
        grid=grid,
        in_specs=[
            pl.BlockSpec((tb, d_in), lambda i: (i, 0)),
            pinned(w1),
            pinned(w2),
            pinned(w3),
            pinned(bias),
        ],
        out_specs=pl.BlockSpec((tb, n_actions), lambda i: (i, 0)),
        compiler_params=pltpu.CompilerParams(
            dimension_semantics=("parallel",),
        ),
        cost_estimate=cost,
    )(state, w1, w2, w3, bias)


def dqn_reference(state, p):
    h1 = jnp.maximum(state @ p["w1"] + p["b1"], 0.0)
    h2 = jnp.maximum(h1 @ p["w2"] + p["b2"], 0.0)
    return h2 @ p["w3"] + p["b3"]


if __name__ == "__main__":
    # Shapes consistent with DeepQNetwork(lr, input_dims=(16,), fc1_dims=32,
    # fc2_dims=32, n_actions=8).
    D_IN, FC1, FC2, N_ACT = 16, 32, 32, 8
    TB = 1024

    key = jax.random.PRNGKey(0)
    k_small, k_large, k_params = jax.random.split(key, 3)

    params = init_params(k_params, D_IN, FC1, FC2, N_ACT)
    prepared = prepare_params(params)  # one-time pad / bf16 / bias-stack

    # Small batch -> grid-less whole-array-in-VMEM path.
    state_small = jax.random.normal(k_small, (256, D_IN), jnp.float32)
    # Larger, non-tile-multiple batch -> tiled grid path (pl.cdiv + masked tail).
    state_large = jax.random.normal(k_large, (2304, D_IN), jnp.float32)

    for state in (state_small, state_large):
        actions = dqn_forward(state, prepared, tb=TB)
        actions = jax.block_until_ready(actions)
        ref = dqn_reference(state, params)
        assert actions.shape == (state.shape[0], N_ACT)
        # bf16 MXU operands with f32 accumulation -> loosened tolerance vs f32 ref.
        assert jnp.allclose(actions, ref, atol=5e-2, rtol=5e-2), (
            float(jnp.max(jnp.abs(actions - ref)))
        )

    print("KERNEL_OK")
</pallas_src>

<mosaic_0001>
module attributes {stable_mosaic.version = 11 : i64} {
  func.func @dqn_kernel(%arg0: memref<256x16xf32, #tpu.memory_space<vmem>>, %arg1: memref<16x128xbf16, #tpu.memory_space<vmem>>, %arg2: memref<128x128xbf16, #tpu.memory_space<vmem>>, %arg3: memref<128x8xbf16, #tpu.memory_space<vmem>>, %arg4: memref<3x128xf32, #tpu.memory_space<vmem>>, %arg5: memref<256x8xf32, #tpu.memory_space<vmem>>) attributes {dimension_semantics = [], scalar_prefetch = 0 : i64, scratch_operands = 0 : i64, tpu.core_type = #tpu.core_type<tc>} {
    %c0 = arith.constant 0 : index
    %c0_0 = arith.constant 0 : index
    %0 = vector.load %arg0[%c0, %c0_0] : memref<256x16xf32, #tpu.memory_space<vmem>>, vector<256x16xf32>
    %1 = arith.truncf %0 : vector<256x16xf32> to vector<256x16xbf16>
    %c0_1 = arith.constant 0 : index
    %c0_2 = arith.constant 0 : index
    %2 = vector.load %arg4[%c0_1, %c0_2] : memref<3x128xf32, #tpu.memory_space<vmem>>, vector<3x128xf32>
    %c0_3 = arith.constant 0 : index
    %c0_4 = arith.constant 0 : index
    %3 = vector.load %arg1[%c0_3, %c0_4] : memref<16x128xbf16, #tpu.memory_space<vmem>>, vector<16x128xbf16>
    %cst = arith.constant dense<0.000000e+00> : vector<256x128xf32>
    %4 = tpu.matmul %1, %3, %cst {dimension_numbers = #tpu.dot_dimension_numbers<[1], [0], [0], [1], [0, 0, 1, 1], [], []>} : vector<256x16xbf16>, vector<16x128xbf16>, vector<256x128xf32> -> vector<256x128xf32>
    %5 = vector.extract_strided_slice %2 {offsets = [0, 0], sizes = [1, 128], strides = [1, 1]} : vector<3x128xf32> to vector<1x128xf32>
    %6 = vector.broadcast %5 : vector<1x128xf32> to vector<256x128xf32>
    %7 = arith.addf %4, %6 : vector<256x128xf32>
    %cst_5 = arith.constant 0.000000e+00 : f32
    %8 = vector.broadcast %cst_5 : f32 to vector<256x128xf32>
    %9 = arith.maximumf %7, %8 : vector<256x128xf32>
    %10 = arith.truncf %9 : vector<256x128xf32> to vector<256x128xbf16>
    %c0_6 = arith.constant 0 : index
    %c0_7 = arith.constant 0 : index
    %11 = vector.load %arg2[%c0_6, %c0_7] : memref<128x128xbf16, #tpu.memory_space<vmem>>, vector<128x128xbf16>
    %cst_8 = arith.constant dense<0.000000e+00> : vector<256x128xf32>
    %12 = tpu.matmul %10, %11, %cst_8 {dimension_numbers = #tpu.dot_dimension_numbers<[1], [0], [0], [1], [0, 0, 1, 1], [], []>} : vector<256x128xbf16>, vector<128x128xbf16>, vector<256x128xf32> -> vector<256x128xf32>
    %13 = vector.extract_strided_slice %2 {offsets = [1, 0], sizes = [1, 128], strides = [1, 1]} : vector<3x128xf32> to vector<1x128xf32>
    %14 = vector.broadcast %13 : vector<1x128xf32> to vector<256x128xf32>
    %15 = arith.addf %12, %14 : vector<256x128xf32>
    %cst_9 = arith.constant 0.000000e+00 : f32
    %16 = vector.broadcast %cst_9 : f32 to vector<256x128xf32>
    %17 = arith.maximumf %15, %16 : vector<256x128xf32>
    %18 = arith.truncf %17 : vector<256x128xf32> to vector<256x128xbf16>
    %c0_10 = arith.constant 0 : index
    %c0_11 = arith.constant 0 : index
    %19 = vector.load %arg3[%c0_10, %c0_11] : memref<128x8xbf16, #tpu.memory_space<vmem>>, vector<128x8xbf16>
    %cst_12 = arith.constant dense<0.000000e+00> : vector<256x8xf32>
    %20 = tpu.matmul %18, %19, %cst_12 {dimension_numbers = #tpu.dot_dimension_numbers<[1], [0], [0], [1], [0, 0, 1, 1], [], []>} : vector<256x128xbf16>, vector<128x8xbf16>, vector<256x8xf32> -> vector<256x8xf32>
    %21 = vector.extract_strided_slice %2 {offsets = [2, 0], sizes = [1, 8], strides = [1, 1]} : vector<3x128xf32> to vector<1x8xf32>
    %22 = vector.broadcast %21 : vector<1x8xf32> to vector<256x8xf32>
    %23 = arith.addf %20, %22 : vector<256x8xf32>
    %c0_13 = arith.constant 0 : index
    %c0_14 = arith.constant 0 : index
    %24 = vector.load %arg5[%c0_13, %c0_14] : memref<256x8xf32, #tpu.memory_space<vmem>>, vector<256x8xf32>
    tpu.vector_store %arg5[%c0_13, %c0_14], %23 {strides = array<i32>} : memref<256x8xf32, #tpu.memory_space<vmem>>, vector<256x8xf32>,
    return
  }
}

</mosaic_0001>

<llo_original>
// kernel: tpu_custom_call.1
$region0: #{tpu_custom_call.1}
  #allocation0 [shape = 'u32[]', space=smem, size = 0x4, offset = 0x4, fixed_abs, tag = 'smem constant byte address 0x4 - core index']
  #allocation1 [shape = 'u32[144,128]{1,0:T(1,128)}', space=vmem, size = 0x12000, scoped, tag = 'internal scratch']
  %s0 = inlined_call_operand.vmem [shape: f32[256,16], index: 0, kind: input, shape index: {}]
  %s1 = inlined_call_operand.vmem [shape: bf16[16,128], index: 1, kind: input, shape index: {}]
  %s2 = inlined_call_operand.vmem [shape: bf16[128,128], index: 2, kind: input, shape index: {}]
  %s3 = inlined_call_operand.vmem [shape: bf16[128,8], index: 3, kind: input, shape index: {}]
  %s4 = inlined_call_operand.vmem [shape: f32[3,128], index: 4, kind: input, shape index: {}]
  %s5 = inlined_call_operand.vmem [shape: f32[256,8], index: 5, kind: output, shape index: {}]
  %s6 = sld [smem:[#allocation0]]
  $region30: #{tpu_custom_call.1} parent=0
    _
  %s8 = ssub.s32 1, %s6
  %s9 = scalar_select 0, %s8, %s6
  // Predicated region
  $region2: #{tpu_custom_call.1} parent=0 // pred_check
    _
  $region3: #{tpu_custom_call.1} parent=0 // pred_check_branch
    %11 = sbr.rel (0) target = $region5
  $region4: #{tpu_custom_call.1} parent=0 // pred_region
    _
  $region5: #{tpu_custom_call.1} parent=0 // pred_fallthru
    _
  // Predicated region
  $region6: #{tpu_custom_call.1} parent=0 // pred_check
    _
  $region7: #{tpu_custom_call.1} parent=0 // pred_check_branch
    %13 = sbr.rel (0) target = $region9
  $region8: #{tpu_custom_call.1} parent=0 // pred_region
    _
  $region9: #{tpu_custom_call.1} parent=0 // pred_fallthru
    _
  // Predicated region
  $region10: #{tpu_custom_call.1} parent=0 // pred_check
    _
  $region11: #{tpu_custom_call.1} parent=0 // pred_check_branch
    %15 = sbr.rel (0) target = $region13
  $region12: #{tpu_custom_call.1} parent=0 // pred_region
    _
  $region13: #{tpu_custom_call.1} parent=0 // pred_fallthru
    _
  // Predicated region
  $region14: #{tpu_custom_call.1} parent=0 // pred_check
    _
  $region15: #{tpu_custom_call.1} parent=0 // pred_check_branch
    %17 = sbr.rel (0) target = $region17
  $region16: #{tpu_custom_call.1} parent=0 // pred_region
    _
  $region17: #{tpu_custom_call.1} parent=0 // pred_fallthru
    _
  // Predicated region
  $region18: #{tpu_custom_call.1} parent=0 // pred_check
    _
  $region19: #{tpu_custom_call.1} parent=0 // pred_check_branch
    %19 = sbr.rel (0) target = $region21
  $region20: #{tpu_custom_call.1} parent=0 // pred_region
    _
  $region21: #{tpu_custom_call.1} parent=0 // pred_fallthru
    _
  %v21 = vld [vmem:[%s0] sm:$0xff]
  %v22 = vld [vmem:[%s0 + $0x8] sm:$0xff]
  %v23 = vld [vmem:[%s0 + $0x10] sm:$0xff]
  %v24 = vld [vmem:[%s0 + $0x18] sm:$0xff]
  %v25 = vld [vmem:[%s0 + $0x20] sm:$0xff]
  %v26 = vld [vmem:[%s0 + $0x28] sm:$0xff]
  %v27 = vld [vmem:[%s0 + $0x30] sm:$0xff]
  %v28 = vld [vmem:[%s0 + $0x38] sm:$0xff]
  %v29 = vld [vmem:[%s0 + $0x40] sm:$0xff]
  %v30 = vld [vmem:[%s0 + $0x48] sm:$0xff]
  %v31 = vld [vmem:[%s0 + $0x50] sm:$0xff]
  %v32 = vld [vmem:[%s0 + $0x58] sm:$0xff]
  %v33 = vld [vmem:[%s0 + $0x60] sm:$0xff]
  %v34 = vld [vmem:[%s0 + $0x68] sm:$0xff]
  %v35 = vld [vmem:[%s0 + $0x70] sm:$0xff]
  %v36 = vld [vmem:[%s0 + $0x78] sm:$0xff]
  %v37 = vld [vmem:[%s0 + $0x80] sm:$0xff]
  %v38 = vld [vmem:[%s0 + $0x88] sm:$0xff]
  %v39 = vld [vmem:[%s0 + $0x90] sm:$0xff]
  %v40 = vld [vmem:[%s0 + $0x98] sm:$0xff]
  %v41 = vld [vmem:[%s0 + $0xa0] sm:$0xff]
  %v42 = vld [vmem:[%s0 + $0xa8] sm:$0xff]
  %v43 = vld [vmem:[%s0 + $0xb0] sm:$0xff]
  %v44 = vld [vmem:[%s0 + $0xb8] sm:$0xff]
  %v45 = vld [vmem:[%s0 + $0xc0] sm:$0xff]
  %v46 = vld [vmem:[%s0 + $0xc8] sm:$0xff]
  %v47 = vld [vmem:[%s0 + $0xd0] sm:$0xff]
  %v48 = vld [vmem:[%s0 + $0xd8] sm:$0xff]
  %v49 = vld [vmem:[%s0 + $0xe0] sm:$0xff]
  %v50 = vld [vmem:[%s0 + $0xe8] sm:$0xff]
  %v51 = vld [vmem:[%s0 + $0xf0] sm:$0xff]
  %v52 = vld [vmem:[%s0 + $0xf8] sm:$0xff]
  %v53 = vpack.c.bf16 %v22, %v21
  %v54 = vpack.c.bf16 %v24, %v23
  %v55 = vpack.c.bf16 %v26, %v25
  %v56 = vpack.c.bf16 %v28, %v27
  %v57 = vpack.c.bf16 %v30, %v29
  %v58 = vpack.c.bf16 %v32, %v31
  %v59 = vpack.c.bf16 %v34, %v33
  %v60 = vpack.c.bf16 %v36, %v35
  %v61 = vpack.c.bf16 %v38, %v37
  %v62 = vpack.c.bf16 %v40, %v39
  %v63 = vpack.c.bf16 %v42, %v41
  %v64 = vpack.c.bf16 %v44, %v43
  %v65 = vpack.c.bf16 %v46, %v45
  %v66 = vpack.c.bf16 %v48, %v47
  %v67 = vpack.c.bf16 %v50, %v49
  %v68 = vpack.c.bf16 %v52, %v51
  %v69 = vld [vmem:[%s4] sm:$0x7]
  %v70 = vld [vmem:[%s1] sm:$0xf]
  %v71 = vld [vmem:[%s1 + $0x4] sm:$0xf]
  %v72 = vlaneseq
  %v73 = vshrl.u32 %v72, 7
  %v74 = vsub.s32 0, %v73
  %v75 = vrot.slane %v69, %v74
  %v78 = vunpack.c.l.b16 %v70
  %v79 = vunpack.c.l.b16 %v71
  %v80 = vpack.c.b16 %v79, %v78
  %vm82 = vcmask 130048
  %v84 = vsel %vm82, %v53, 0
  %v87 = vsel %vm82, %v54, 0
  %v90 = vsel %vm82, %v55, 0
  %v93 = vsel %vm82, %v56, 0
  %v96 = vsel %vm82, %v57, 0
  %v99 = vsel %vm82, %v58, 0
  %v102 = vsel %vm82, %v59, 0
  %v105 = vsel %vm82, %v60, 0
  %v108 = vsel %vm82, %v61, 0
  %v111 = vsel %vm82, %v62, 0
  %v114 = vsel %vm82, %v63, 0
  %v117 = vsel %vm82, %v64, 0
  %v120 = vsel %vm82, %v65, 0
  %v123 = vsel %vm82, %v66, 0
  %v126 = vsel %vm82, %v67, 0
  %v129 = vsel %vm82, %v68, 0
  %131 = vmatprep.subr.bf16.mxu0 0
  %132 = vmatpush1.bf16.msra.mxu0 0
  %133 = vmatprep.subr.bf16.mxu0 0
  %134 = vmatpush1.bf16.msra.mxu0 0
  %135 = vmatprep.subr.bf16.mxu0 0
  %136 = vmatpush1.bf16.msra.mxu0 0
  %137 = vmatprep.subr.bf16.mxu0 0
  %138 = vmatpush1.bf16.msra.mxu0 0
  %139 = vmatprep.subr.bf16.mxu0 0
  %140 = vmatpush1.bf16.msra.mxu0 0
  %141 = vmatprep.subr.bf16.mxu0 0
  %142 = vmatpush1.bf16.msra.mxu0 0
  %143 = vmatprep.subr.bf16.mxu0 0
  %144 = vmatpush1.bf16.msra.mxu0 0
  %145 = vmatprep.subr.bf16.mxu0 0
  %146 = vmatpush1.bf16.msra.mxu0 %v80
  %147 = vmatprep.subr.bf16.mxu0 0
  %148 = vmatpush2.bf16.msra.mxu0 0
  %149 = vmatprep.subr.bf16.mxu0 0
  %150 = vmatpush2.bf16.msra.mxu0 0
  %151 = vmatprep.subr.bf16.mxu0 0
  %152 = vmatpush2.bf16.msra.mxu0 0
  %153 = vmatprep.subr.bf16.mxu0 0
  %154 = vmatpush2.bf16.msra.mxu0 0
  %155 = vmatprep.subr.bf16.mxu0 0
  %156 = vmatpush2.bf16.msra.mxu0 0
  %157 = vmatprep.subr.bf16.mxu0 0
  %158 = vmatpush2.bf16.msra.mxu0 0
  %159 = vmatprep.subr.bf16.mxu0 0
  %160 = vmatpush2.bf16.msra.mxu0 0
  %161 = vmatprep.subr.bf16.mxu0 0
  %162 = vmatpush2.bf16.msra.mxu0 0
  %163 = vmatprep.mubr.bf16.mxu0 0
  %164 = vmatmul.mubr.bf16.gmra.mxu0 %v84
  %v165 = vpop.f32.mrf.mxu0
  %v166 = vadd.f32 %v75, %v165
  %v167 = vpop.f32.mrf.mxu0
  %v168 = vpop.f32.mrf.mxu0
  %v169 = vadd.f32 %v75, %v168
  %v170 = vpop.f32.mrf.mxu0
  %171 = vmatprep.mubr.bf16.mxu0 0
  %172 = vmatmul.mubr.bf16.gmra.mxu0 %v87
  %v173 = vpop.f32.mrf.mxu0
  %v174 = vadd.f32 %v75, %v173
  %v175 = vpop.f32.mrf.mxu0
  %v176 = vpop.f32.mrf.mxu0
  %v177 = vadd.f32 %v75, %v176
  %v178 = vpop.f32.mrf.mxu0
  %179 = vmatprep.mubr.bf16.mxu0 0
  %180 = vmatmul.mubr.bf16.gmra.mxu0 %v90
  %v181 = vpop.f32.mrf.mxu0
  %v182 = vadd.f32 %v75, %v181
  %v183 = vpop.f32.mrf.mxu0
  %v184 = vpop.f32.mrf.mxu0
  %v185 = vadd.f32 %v75, %v184
  %v186 = vpop.f32.mrf.mxu0
  %187 = vmatprep.mubr.bf16.mxu0 0
  %188 = vmatmul.mubr.bf16.gmra.mxu0 %v93
  %v189 = vpop.f32.mrf.mxu0
  %v190 = vadd.f32 %v75, %v189
  %v191 = vpop.f32.mrf.mxu0
  %v192 = vpop.f32.mrf.mxu0
  %v193 = vadd.f32 %v75, %v192
  %v194 = vpop.f32.mrf.mxu0
  %195 = vmatprep.mubr.bf16.mxu0 0
  %196 = vmatmul.mubr.bf16.gmra.mxu0 %v96
  %v197 = vpop.f32.mrf.mxu0
  %v198 = vadd.f32 %v75, %v197
  %v199 = vpop.f32.mrf.mxu0
  %v200 = vpop.f32.mrf.mxu0
  %v201 = vadd.f32 %v75, %v200
  %v202 = vpop.f32.mrf.mxu0
  %203 = vmatprep.mubr.bf16.mxu0 0
  %204 = vmatmul.mubr.bf16.gmra.mxu0 %v99
  %v205 = vpop.f32.mrf.mxu0
  %v206 = vadd.f32 %v75, %v205
  %v207 = vpop.f32.mrf.mxu0
  %v208 = vpop.f32.mrf.mxu0
  %v209 = vadd.f32 %v75, %v208
  %v210 = vpop.f32.mrf.mxu0
  %211 = vmatprep.mubr.bf16.mxu0 0
  %212 = vmatmul.mubr.bf16.gmra.mxu0 %v102
  %v213 = vpop.f32.mrf.mxu0
  %v214 = vadd.f32 %v75, %v213
  %v215 = vpop.f32.mrf.mxu0
  %v216 = vpop.f32.mrf.mxu0
  %v217 = vadd.f32 %v75, %v216
  %v218 = vpop.f32.mrf.mxu0
  %219 = vmatprep.mubr.bf16.mxu0 0
  %220 = vmatmul.mubr.bf16.gmra.mxu0 %v105
  %v221 = vpop.f32.mrf.mxu0
  %v222 = vadd.f32 %v75, %v221
  %v223 = vpop.f32.mrf.mxu0
  %v224 = vpop.f32.mrf.mxu0
  %v225 = vadd.f32 %v75, %v224
  %v226 = vpop.f32.mrf.mxu0
  %227 = vmatprep.mubr.bf16.mxu0 0
  %228 = vmatmul.mubr.bf16.gmra.mxu0 %v108
  %v229 = vpop.f32.mrf.mxu0
  %v230 = vadd.f32 %v75, %v229
  %v231 = vpop.f32.mrf.mxu0
  %v232 = vpop.f32.mrf.mxu0
  %v233 = vadd.f32 %v75, %v232
  %v234 = vpop.f32.mrf.mxu0
  %235 = vmatprep.mubr.bf16.mxu0 0
  %236 = vmatmul.mubr.bf16.gmra.mxu0 %v111
  %v237 = vpop.f32.mrf.mxu0
  %v238 = vadd.f32 %v75, %v237
  %v239 = vpop.f32.mrf.mxu0
  %v240 = vpop.f32.mrf.mxu0
  %v241 = vadd.f32 %v75, %v240
  %v242 = vpop.f32.mrf.mxu0
  %243 = vmatprep.mubr.bf16.mxu0 0
  %244 = vmatmul.mubr.bf16.gmra.mxu0 %v114
  %v245 = vpop.f32.mrf.mxu0
  %v246 = vadd.f32 %v75, %v245
  %v247 = vpop.f32.mrf.mxu0
  %v248 = vpop.f32.mrf.mxu0
  %v249 = vadd.f32 %v75, %v248
  %v250 = vpop.f32.mrf.mxu0
  %251 = vmatprep.mubr.bf16.mxu0 0
  %252 = vmatmul.mubr.bf16.gmra.mxu0 %v117
  %v253 = vpop.f32.mrf.mxu0
  %v254 = vadd.f32 %v75, %v253
  %v255 = vpop.f32.mrf.mxu0
  %v256 = vpop.f32.mrf.mxu0
  %v257 = vadd.f32 %v75, %v256
  %v258 = vpop.f32.mrf.mxu0
  %259 = vmatprep.mubr.bf16.mxu0 0
  %260 = vmatmul.mubr.bf16.gmra.mxu0 %v120
  %v261 = vpop.f32.mrf.mxu0
  %v262 = vadd.f32 %v75, %v261
  %v263 = vpop.f32.mrf.mxu0
  %v264 = vpop.f32.mrf.mxu0
  %v265 = vadd.f32 %v75, %v264
  %v266 = vpop.f32.mrf.mxu0
  %267 = vmatprep.mubr.bf16.mxu0 0
  %268 = vmatmul.mubr.bf16.gmra.mxu0 %v123
  %v269 = vpop.f32.mrf.mxu0
  %v270 = vadd.f32 %v75, %v269
  %v271 = vpop.f32.mrf.mxu0
  %v272 = vpop.f32.mrf.mxu0
  %v273 = vadd.f32 %v75, %v272
  %v274 = vpop.f32.mrf.mxu0
  %275 = vmatprep.mubr.bf16.mxu0 0
  %276 = vmatmul.mubr.bf16.gmra.mxu0 %v126
  %v277 = vpop.f32.mrf.mxu0
  %v278 = vadd.f32 %v75, %v277
  %v279 = vpop.f32.mrf.mxu0
  %v280 = vpop.f32.mrf.mxu0
  %v281 = vadd.f32 %v75, %v280
  %v282 = vpop.f32.mrf.mxu0
  %283 = vmatprep.mubr.bf16.mxu0 0
  %284 = vmatmul.mubr.bf16.gmra.mxu0 %v129
  %v285 = vpop.f32.mrf.mxu0
  %v286 = vadd.f32 %v75, %v285
  %v287 = vpop.f32.mrf.mxu0
  %v288 = vpop.f32.mrf.mxu0
  %v289 = vadd.f32 %v75, %v288
  %v290 = vpop.f32.mrf.mxu0
  %291 = vdwg.mxu0
  %v292 = vmax.f32 %v166, 0.0
  %v293 = vmax.f32 %v169, 0.0
  %v294 = vmax.f32 %v174, 0.0
  %v295 = vmax.f32 %v177, 0.0
  %v296 = vmax.f32 %v182, 0.0
  %v297 = vmax.f32 %v185, 0.0
  %v298 = vmax.f32 %v190, 0.0
  %v299 = vmax.f32 %v193, 0.0
  %v300 = vmax.f32 %v198, 0.0
  %v301 = vmax.f32 %v201, 0.0
  %v302 = vmax.f32 %v206, 0.0
  %v303 = vmax.f32 %v209, 0.0
  %v304 = vmax.f32 %v214, 0.0
  %v305 = vmax.f32 %v217, 0.0
  %v306 = vmax.f32 %v222, 0.0
  %v307 = vmax.f32 %v225, 0.0
  %v308 = vmax.f32 %v230, 0.0
  %v309 = vmax.f32 %v233, 0.0
  %v310 = vmax.f32 %v238, 0.0
  %v311 = vmax.f32 %v241, 0.0
  %v312 = vmax.f32 %v246, 0.0
  %v313 = vmax.f32 %v249, 0.0
  %v314 = vmax.f32 %v254, 0.0
  %v315 = vmax.f32 %v257, 0.0
  %v316 = vmax.f32 %v262, 0.0
  %v317 = vmax.f32 %v265, 0.0
  %v318 = vmax.f32 %v270, 0.0
  %v319 = vmax.f32 %v273, 0.0
  %v320 = vmax.f32 %v278, 0.0
  %v321 = vmax.f32 %v281, 0.0
  %v322 = vmax.f32 %v286, 0.0
  %v323 = vmax.f32 %v289, 0.0
  %v324 = vpack.c.bf16 %v293, %v292
  %v325 = vpack.c.bf16 %v295, %v294
  %v326 = vpack.c.bf16 %v297, %v296
  %v327 = vpack.c.bf16 %v299, %v298
  %v328 = vpack.c.bf16 %v301, %v300
  %v329 = vpack.c.bf16 %v303, %v302
  %v330 = vpack.c.bf16 %v305, %v304
  %v331 = vpack.c.bf16 %v307, %v306
  %v332 = vpack.c.bf16 %v309, %v308
  %v333 = vpack.c.bf16 %v311, %v310
  %v334 = vpack.c.bf16 %v313, %v312
  %v335 = vpack.c.bf16 %v315, %v314
  %v336 = vpack.c.bf16 %v317, %v316
  %v337 = vpack.c.bf16 %v319, %v318
  %v338 = vpack.c.bf16 %v321, %v320
  %v339 = vpack.c.bf16 %v323, %v322
  %v340 = vld [vmem:[%s2] sm:$0xf]
  %v341 = vld [vmem:[%s2 + $0x4] sm:$0xf]
  %v342 = vld [vmem:[%s2 + $0x8] sm:$0xf]
  %v343 = vld [vmem:[%s2 + $0xc] sm:$0xf]
  %v344 = vld [vmem:[%s2 + $0x10] sm:$0xf]
  %v345 = vld [vmem:[%s2 + $0x14] sm:$0xf]
  %v346 = vld [vmem:[%s2 + $0x18] sm:$0xf]
  %v347 = vld [vmem:[%s2 + $0x1c] sm:$0xf]
  %v348 = vld [vmem:[%s2 + $0x20] sm:$0xf]
  %v349 = vld [vmem:[%s2 + $0x24] sm:$0xf]
  %v350 = vld [vmem:[%s2 + $0x28] sm:$0xf]
  %v351 = vld [vmem:[%s2 + $0x2c] sm:$0xf]
  %v352 = vld [vmem:[%s2 + $0x30] sm:$0xf]
  %v353 = vld [vmem:[%s2 + $0x34] sm:$0xf]
  %v354 = vld [vmem:[%s2 + $0x38] sm:$0xf]
  %v355 = vld [vmem:[%s2 + $0x3c] sm:$0xf]
  %v356 = vlaneseq
  %v357 = vshrl.u32 %v356, 7
  %v358 = vsub.s32 1, %v357
  %v359 = vrot.slane %v69, %v358
  %v376 = vunpack.c.l.b16 %v340
  %v377 = vunpack.c.l.b16 %v341
  %v378 = vunpack.c.l.b16 %v342
  %v379 = vunpack.c.l.b16 %v343
  %v380 = vunpack.c.l.b16 %v344
  %v381 = vunpack.c.l.b16 %v345
  %v382 = vunpack.c.l.b16 %v346
  %v383 = vunpack.c.l.b16 %v347
  %v384 = vunpack.c.l.b16 %v348
  %v385 = vunpack.c.l.b16 %v349
  %v386 = vunpack.c.l.b16 %v350
  %v387 = vunpack.c.l.b16 %v351
  %v388 = vunpack.c.l.b16 %v352
  %v389 = vunpack.c.l.b16 %v353
  %v390 = vunpack.c.l.b16 %v354
  %v391 = vunpack.c.l.b16 %v355
  %v392 = vpack.c.b16 %v377, %v376
  %v393 = vpack.c.b16 %v379, %v378
  %v394 = vpack.c.b16 %v381, %v380
  %v395 = vpack.c.b16 %v383, %v382
  %v396 = vpack.c.b16 %v385, %v384
  %v397 = vpack.c.b16 %v387, %v386
  %v398 = vpack.c.b16 %v389, %v388
  %v399 = vpack.c.b16 %v391, %v390
  %408 = vmatprep.subr.bf16.mxu0 0
  %409 = vmatpush1.bf16.msra.mxu0 %v399
  %410 = vmatprep.subr.bf16.mxu0 0
  %411 = vmatpush1.bf16.msra.mxu0 %v398
  %412 = vmatprep.subr.bf16.mxu0 0
  %413 = vmatpush1.bf16.msra.mxu0 %v397
  %414 = vmatprep.subr.bf16.mxu0 0
  %415 = vmatpush1.bf16.msra.mxu0 %v396
  %416 = vmatprep.subr.bf16.mxu0 0
  %417 = vmatpush1.bf16.msra.mxu0 %v395
  %418 = vmatprep.subr.bf16.mxu0 0
  %419 = vmatpush1.bf16.msra.mxu0 %v394
  %420 = vmatprep.subr.bf16.mxu0 0
  %421 = vmatpush1.bf16.msra.mxu0 %v393
  %422 = vmatprep.subr.bf16.mxu0 0
  %423 = vmatpush1.bf16.msra.mxu0 %v392
  %424 = vmatprep.subr.bf16.mxu0 0
  %425 = vmatpush2.bf16.msra.mxu0 0
  %426 = vmatprep.subr.bf16.mxu0 0
  %427 = vmatpush2.bf16.msra.mxu0 0
  %428 = vmatprep.subr.bf16.mxu0 0
  %429 = vmatpush2.bf16.msra.mxu0 0
  %430 = vmatprep.subr.bf16.mxu0 0
  %431 = vmatpush2.bf16.msra.mxu0 0
  %432 = vmatprep.subr.bf16.mxu0 0
  %433 = vmatpush2.bf16.msra.mxu0 0
  %434 = vmatprep.subr.bf16.mxu0 0
  %435 = vmatpush2.bf16.msra.mxu0 0
  %436 = vmatprep.subr.bf16.mxu0 0
  %437 = vmatpush2.bf16.msra.mxu0 0
  %438 = vmatprep.subr.bf16.mxu0 0
  %439 = vmatpush2.bf16.msra.mxu0 0
  %440 = vmatprep.mubr.bf16.mxu0 0
  %441 = vmatmul.mubr.bf16.gmra.mxu0 %v324
  %v442 = vpop.f32.mrf.mxu0
  %v443 = vadd.f32 %v359, %v442
  %v444 = vpop.f32.mrf.mxu0
  %v445 = vpop.f32.mrf.mxu0
  %v446 = vadd.f32 %v359, %v445
  %v447 = vpop.f32.mrf.mxu0
  %448 = vmatprep.mubr.bf16.mxu0 0
  %449 = vmatmul.mubr.bf16.gmra.mxu0 %v325
  %v450 = vpop.f32.mrf.mxu0
  %v451 = vadd.f32 %v359, %v450
  %v452 = vpop.f32.mrf.mxu0
  %v453 = vpop.f32.mrf.mxu0
  %v454 = vadd.f32 %v359, %v453
  %v455 = vpop.f32.mrf.mxu0
  %456 = vmatprep.mubr.bf16.mxu0 0
  %457 = vmatmul.mubr.bf16.gmra.mxu0 %v326
  %v458 = vpop.f32.mrf.mxu0
  %v459 = vadd.f32 %v359, %v458
  %v460 = vpop.f32.mrf.mxu0
  %v461 = vpop.f32.mrf.mxu0
  %v462 = vadd.f32 %v359, %v461
  %v463 = vpop.f32.mrf.mxu0
  %464 = vmatprep.mubr.bf16.mxu0 0
  %465 = vmatmul.mubr.bf16.gmra.mxu0 %v327
  %v466 = vpop.f32.mrf.mxu0
  %v467 = vadd.f32 %v359, %v466
  %v468 = vpop.f32.mrf.mxu0
  %v469 = vpop.f32.mrf.mxu0
  %v470 = vadd.f32 %v359, %v469
  %v471 = vpop.f32.mrf.mxu0
  %472 = vmatprep.mubr.bf16.mxu0 0
  %473 = vmatmul.mubr.bf16.gmra.mxu0 %v328
  %v474 = vpop.f32.mrf.mxu0
  %v475 = vadd.f32 %v359, %v474
  %v476 = vpop.f32.mrf.mxu0
  %v477 = vpop.f32.mrf.mxu0
  %v478 = vadd.f32 %v359, %v477
  %v479 = vpop.f32.mrf.mxu0
  %480 = vmatprep.mubr.bf16.mxu0 0
  %481 = vmatmul.mubr.bf16.gmra.mxu0 %v329
  %v482 = vpop.f32.mrf.mxu0
  %v483 = vadd.f32 %v359, %v482
  %v484 = vpop.f32.mrf.mxu0
  %v485 = vpop.f32.mrf.mxu0
  %v486 = vadd.f32 %v359, %v485
  %v487 = vpop.f32.mrf.mxu0
  %488 = vmatprep.mubr.bf16.mxu0 0
  %489 = vmatmul.mubr.bf16.gmra.mxu0 %v330
  %v490 = vpop.f32.mrf.mxu0
  %v491 = vadd.f32 %v359, %v490
  %v492 = vpop.f32.mrf.mxu0
  %v493 = vpop.f32.mrf.mxu0
  %v494 = vadd.f32 %v359, %v493
  %v495 = vpop.f32.mrf.mxu0
  %496 = vmatprep.mubr.bf16.mxu0 0
  %497 = vmatmul.mubr.bf16.gmra.mxu0 %v331
  %v498 = vpop.f32.mrf.mxu0
  %v499 = vadd.f32 %v359, %v498
  %v500 = vpop.f32.mrf.mxu0
  %v501 = vpop.f32.mrf.mxu0
  %v502 = vadd.f32 %v359, %v501
  %v503 = vpop.f32.mrf.mxu0
  %504 = vmatprep.mubr.bf16.mxu0 0
  %505 = vmatmul.mubr.bf16.gmra.mxu0 %v332
  %v506 = vpop.f32.mrf.mxu0
  %v507 = vadd.f32 %v359, %v506
  %v508 = vpop.f32.mrf.mxu0
  %v509 = vpop.f32.mrf.mxu0
  %v510 = vadd.f32 %v359, %v509
  %v511 = vpop.f32.mrf.mxu0
  %512 = vmatprep.mubr.bf16.mxu0 0
  %513 = vmatmul.mubr.bf16.gmra.mxu0 %v333
  %v514 = vpop.f32.mrf.mxu0
  %v515 = vadd.f32 %v359, %v514
  %v516 = vpop.f32.mrf.mxu0
  %v517 = vpop.f32.mrf.mxu0
  %v518 = vadd.f32 %v359, %v517
  %v519 = vpop.f32.mrf.mxu0
  %520 = vmatprep.mubr.bf16.mxu0 0
  %521 = vmatmul.mubr.bf16.gmra.mxu0 %v334
  %v522 = vpop.f32.mrf.mxu0
  %v523 = vadd.f32 %v359, %v522
  %v524 = vpop.f32.mrf.mxu0
  %v525 = vpop.f32.mrf.mxu0
  %v526 = vadd.f32 %v359, %v525
  %v527 = vpop.f32.mrf.mxu0
  %528 = vmatprep.mubr.bf16.mxu0 0
  %529 = vmatmul.mubr.bf16.gmra.mxu0 %v335
  %v530 = vpop.f32.mrf.mxu0
  %v531 = vadd.f32 %v359, %v530
  %v532 = vpop.f32.mrf.mxu0
  %v533 = vpop.f32.mrf.mxu0
  %v534 = vadd.f32 %v359, %v533
  %v535 = vpop.f32.mrf.mxu0
  %536 = vmatprep.mubr.bf16.mxu0 0
  %537 = vmatmul.mubr.bf16.gmra.mxu0 %v336
  %v538 = vpop.f32.mrf.mxu0
  %v539 = vadd.f32 %v359, %v538
  %v540 = vpop.f32.mrf.mxu0
  %v541 = vpop.f32.mrf.mxu0
  %v542 = vadd.f32 %v359, %v541
  %v543 = vpop.f32.mrf.mxu0
  %544 = vmatprep.mubr.bf16.mxu0 0
  %545 = vmatmul.mubr.bf16.gmra.mxu0 %v337
  %v546 = vpop.f32.mrf.mxu0
  %v547 = vadd.f32 %v359, %v546
  %v548 = vpop.f32.mrf.mxu0
  %v549 = vpop.f32.mrf.mxu0
  %v550 = vadd.f32 %v359, %v549
  %v551 = vpop.f32.mrf.mxu0
  %552 = vmatprep.mubr.bf16.mxu0 0
  %553 = vmatmul.mubr.bf16.gmra.mxu0 %v338
  %v554 = vpop.f32.mrf.mxu0
  %v555 = vadd.f32 %v359, %v554
  %v556 = vpop.f32.mrf.mxu0
  %v557 = vpop.f32.mrf.mxu0
  %v558 = vadd.f32 %v359, %v557
  %v559 = vpop.f32.mrf.mxu0
  %560 = vmatprep.mubr.bf16.mxu0 0
  %561 = vmatmul.mubr.bf16.gmra.mxu0 %v339
  %v562 = vpop.f32.mrf.mxu0
  %v563 = vadd.f32 %v359, %v562
  %v564 = vpop.f32.mrf.mxu0
  %v565 = vpop.f32.mrf.mxu0
  %v566 = vadd.f32 %v359, %v565
  %v567 = vpop.f32.mrf.mxu0
  %568 = vdwg.mxu0
  %v569 = vmax.f32 %v443, 0.0
  %v570 = vmax.f32 %v446, 0.0
  %v571 = vmax.f32 %v451, 0.0
  %v572 = vmax.f32 %v454, 0.0
  %v573 = vmax.f32 %v459, 0.0
  %v574 = vmax.f32 %v462, 0.0
  %v575 = vmax.f32 %v467, 0.0
  %v576 = vmax.f32 %v470, 0.0
  %v577 = vmax.f32 %v475, 0.0
  %v578 = vmax.f32 %v478, 0.0
  %v579 = vmax.f32 %v483, 0.0
  %v580 = vmax.f32 %v486, 0.0
  %v581 = vmax.f32 %v491, 0.0
  %v582 = vmax.f32 %v494, 0.0
  %v583 = vmax.f32 %v499, 0.0
  %v584 = vmax.f32 %v502, 0.0
  %v585 = vmax.f32 %v507, 0.0
  %v586 = vmax.f32 %v510, 0.0
  %v587 = vmax.f32 %v515, 0.0
  %v588 = vmax.f32 %v518, 0.0
  %v589 = vmax.f32 %v523, 0.0
  %v590 = vmax.f32 %v526, 0.0
  %v591 = vmax.f32 %v531, 0.0
  %v592 = vmax.f32 %v534, 0.0
  %v593 = vmax.f32 %v539, 0.0
  %v594 = vmax.f32 %v542, 0.0
  %v595 = vmax.f32 %v547, 0.0
  %v596 = vmax.f32 %v550, 0.0
  %v597 = vmax.f32 %v555, 0.0
  %v598 = vmax.f32 %v558, 0.0
  %v599 = vmax.f32 %v563, 0.0
  %v600 = vmax.f32 %v566, 0.0
  %v601 = vpack.c.bf16 %v570, %v569
  %v602 = vpack.c.bf16 %v572, %v571
  %v603 = vpack.c.bf16 %v574, %v573
  %v604 = vpack.c.bf16 %v576, %v575
  %v605 = vpack.c.bf16 %v578, %v577
  %v606 = vpack.c.bf16 %v580, %v579
  %v607 = vpack.c.bf16 %v582, %v581
  %v608 = vpack.c.bf16 %v584, %v583
  %v609 = vpack.c.bf16 %v586, %v585
  %v610 = vpack.c.bf16 %v588, %v587
  %v611 = vpack.c.bf16 %v590, %v589
  %v612 = vpack.c.bf16 %v592, %v591
  %v613 = vpack.c.bf16 %v594, %v593
  %v614 = vpack.c.bf16 %v596, %v595
  %v615 = vpack.c.bf16 %v598, %v597
  %v616 = vpack.c.bf16 %v600, %v599
  %v617 = vld [vmem:[%s3] sm:$0xf]
  %v618 = vld [vmem:[%s3 + $0x4] sm:$0xf]
  %v619 = vld [vmem:[%s3 + $0x8] sm:$0xf]
  %v620 = vld [vmem:[%s3 + $0xc] sm:$0xf]
  %v621 = vld [vmem:[%s3 + $0x10] sm:$0xf]
  %v622 = vld [vmem:[%s3 + $0x14] sm:$0xf]
  %v623 = vld [vmem:[%s3 + $0x18] sm:$0xf]
  %v624 = vld [vmem:[%s3 + $0x1c] sm:$0xf]
  %v625 = vld [vmem:[%s3 + $0x20] sm:$0xf]
  %v626 = vld [vmem:[%s3 + $0x24] sm:$0xf]
  %v627 = vld [vmem:[%s3 + $0x28] sm:$0xf]
  %v628 = vld [vmem:[%s3 + $0x2c] sm:$0xf]
  %v629 = vld [vmem:[%s3 + $0x30] sm:$0xf]
  %v630 = vld [vmem:[%s3 + $0x34] sm:$0xf]
  %v631 = vld [vmem:[%s3 + $0x38] sm:$0xf]
  %v632 = vld [vmem:[%s3 + $0x3c] sm:$0xf]
  %v633 = vlaneseq
  %v634 = vshrl.u32 %v633, 7
  %v635 = vsub.s32 2, %v634
  %v636 = vrot.slane %v69, %v635
  %v653 = vunpack.c.l.b16 %v617
  %v654 = vunpack.c.l.b16 %v618
  %v655 = vunpack.c.l.b16 %v619
  %v656 = vunpack.c.l.b16 %v620
  %v657 = vunpack.c.l.b16 %v621
  %v658 = vunpack.c.l.b16 %v622
  %v659 = vunpack.c.l.b16 %v623
  %v660 = vunpack.c.l.b16 %v624
  %v661 = vunpack.c.l.b16 %v625
  %v662 = vunpack.c.l.b16 %v626
  %v663 = vunpack.c.l.b16 %v627
  %v664 = vunpack.c.l.b16 %v628
  %v665 = vunpack.c.l.b16 %v629
  %v666 = vunpack.c.l.b16 %v630
  %v667 = vunpack.c.l.b16 %v631
  %v668 = vunpack.c.l.b16 %v632
  %v669 = vpack.c.b16 %v654, %v653
  %v670 = vpack.c.b16 %v656, %v655
  %v671 = vpack.c.b16 %v658, %v657
  %v672 = vpack.c.b16 %v660, %v659
  %v673 = vpack.c.b16 %v662, %v661
  %v674 = vpack.c.b16 %v664, %v663
  %v675 = vpack.c.b16 %v666, %v665
  %v676 = vpack.c.b16 %v668, %v667
  %685 = vmatprep.subr.bf16.mxu0 0
  %686 = vmatpush1.bf16.msra.mxu0 %v676
  %687 = vmatprep.subr.bf16.mxu0 0
  %688 = vmatpush1.bf16.msra.mxu0 %v675
  %689 = vmatprep.subr.bf16.mxu0 0
  %690 = vmatpush1.bf16.msra.mxu0 %v674
  %691 = vmatprep.subr.bf16.mxu0 0
  %692 = vmatpush1.bf16.msra.mxu0 %v673
  %693 = vmatprep.subr.bf16.mxu0 0
  %694 = vmatpush1.bf16.msra.mxu0 %v672
  %695 = vmatprep.subr.bf16.mxu0 0
  %696 = vmatpush1.bf16.msra.mxu0 %v671
  %697 = vmatprep.subr.bf16.mxu0 0
  %698 = vmatpush1.bf16.msra.mxu0 %v670
  %699 = vmatprep.subr.bf16.mxu0 0
  %700 = vmatpush1.bf16.msra.mxu0 %v669
  %701 = vmatprep.subr.bf16.mxu0 0
  %702 = vmatpush2.bf16.msra.mxu0 0
  %703 = vmatprep.subr.bf16.mxu0 0
  %704 = vmatpush2.bf16.msra.mxu0 0
  %705 = vmatprep.subr.bf16.mxu0 0
  %706 = vmatpush2.bf16.msra.mxu0 0
  %707 = vmatprep.subr.bf16.mxu0 0
  %708 = vmatpush2.bf16.msra.mxu0 0
  %709 = vmatprep.subr.bf16.mxu0 0
  %710 = vmatpush2.bf16.msra.mxu0 0
  %711 = vmatprep.subr.bf16.mxu0 0
  %712 = vmatpush2.bf16.msra.mxu0 0
  %713 = vmatprep.subr.bf16.mxu0 0
  %714 = vmatpush2.bf16.msra.mxu0 0
  %715 = vmatprep.subr.bf16.mxu0 0
  %716 = vmatpush2.bf16.msra.mxu0 0
  %717 = vmatprep.mubr.bf16.mxu0 0
  %718 = vmatmul.mubr.bf16.gmra.mxu0 %v601
  %v719 = vpop.f32.mrf.mxu0
  %v720 = vadd.f32 %v636, %v719
  %v721 = vpop.f32.mrf.mxu0
  %v722 = vpop.f32.mrf.mxu0
  %v723 = vadd.f32 %v636, %v722
  %v724 = vpop.f32.mrf.mxu0
  %725 = vmatprep.mubr.bf16.mxu0 0
  %726 = vmatmul.mubr.bf16.gmra.mxu0 %v602
  %v727 = vpop.f32.mrf.mxu0
  %v728 = vadd.f32 %v636, %v727
  %v729 = vpop.f32.mrf.mxu0
  %v730 = vpop.f32.mrf.mxu0
  %v731 = vadd.f32 %v636, %v730
  %v732 = vpop.f32.mrf.mxu0
  %733 = vmatprep.mubr.bf16.mxu0 0
  %734 = vmatmul.mubr.bf16.gmra.mxu0 %v603
  %v735 = vpop.f32.mrf.mxu0
  %v736 = vadd.f32 %v636, %v735
  %v737 = vpop.f32.mrf.mxu0
  %v738 = vpop.f32.mrf.mxu0
  %v739 = vadd.f32 %v636, %v738
  %v740 = vpop.f32.mrf.mxu0
  %741 = vmatprep.mubr.bf16.mxu0 0
  %742 = vmatmul.mubr.bf16.gmra.mxu0 %v604
  %v743 = vpop.f32.mrf.mxu0
  %v744 = vadd.f32 %v636, %v743
  %v745 = vpop.f32.mrf.mxu0
  %v746 = vpop.f32.mrf.mxu0
  %v747 = vadd.f32 %v636, %v746
  %v748 = vpop.f32.mrf.mxu0
  %749 = vmatprep.mubr.bf16.mxu0 0
  %750 = vmatmul.mubr.bf16.gmra.mxu0 %v605
  %v751 = vpop.f32.mrf.mxu0
  %v752 = vadd.f32 %v636, %v751
  %v753 = vpop.f32.mrf.mxu0
  %v754 = vpop.f32.mrf.mxu0
  %v755 = vadd.f32 %v636, %v754
  %v756 = vpop.f32.mrf.mxu0
  %757 = vmatprep.mubr.bf16.mxu0 0
  %758 = vmatmul.mubr.bf16.gmra.mxu0 %v606
  %v759 = vpop.f32.mrf.mxu0
  %v760 = vadd.f32 %v636, %v759
  %v761 = vpop.f32.mrf.mxu0
  %v762 = vpop.f32.mrf.mxu0
  %v763 = vadd.f32 %v636, %v762
  %v764 = vpop.f32.mrf.mxu0
  %765 = vmatprep.mubr.bf16.mxu0 0
  %766 = vmatmul.mubr.bf16.gmra.mxu0 %v607
  %v767 = vpop.f32.mrf.mxu0
  %v768 = vadd.f32 %v636, %v767
  %v769 = vpop.f32.mrf.mxu0
  %v770 = vpop.f32.mrf.mxu0
  %v771 = vadd.f32 %v636, %v770
  %v772 = vpop.f32.mrf.mxu0
  %773 = vmatprep.mubr.bf16.mxu0 0
  %774 = vmatmul.mubr.bf16.gmra.mxu0 %v608
  %v775 = vpop.f32.mrf.mxu0
  %v776 = vadd.f32 %v636, %v775
  %v777 = vpop.f32.mrf.mxu0
  %v778 = vpop.f32.mrf.mxu0
  %v779 = vadd.f32 %v636, %v778
  %v780 = vpop.f32.mrf.mxu0
  %781 = vmatprep.mubr.bf16.mxu0 0
  %782 = vmatmul.mubr.bf16.gmra.mxu0 %v609
  %v783 = vpop.f32.mrf.mxu0
  %v784 = vadd.f32 %v636, %v783
  %v785 = vpop.f32.mrf.mxu0
  %v786 = vpop.f32.mrf.mxu0
  %v787 = vadd.f32 %v636, %v786
  %v788 = vpop.f32.mrf.mxu0
  %789 = vmatprep.mubr.bf16.mxu0 0
  %790 = vmatmul.mubr.bf16.gmra.mxu0 %v610
  %v791 = vpop.f32.mrf.mxu0
  %v792 = vadd.f32 %v636, %v791
  %v793 = vpop.f32.mrf.mxu0
  %v794 = vpop.f32.mrf.mxu0
  %v795 = vadd.f32 %v636, %v794
  %v796 = vpop.f32.mrf.mxu0
  %797 = vmatprep.mubr.bf16.mxu0 0
  %798 = vmatmul.mubr.bf16.gmra.mxu0 %v611
  %v799 = vpop.f32.mrf.mxu0
  %v800 = vadd.f32 %v636, %v799
  %v801 = vpop.f32.mrf.mxu0
  %v802 = vpop.f32.mrf.mxu0
  %v803 = vadd.f32 %v636, %v802
  %v804 = vpop.f32.mrf.mxu0
  %805 = vmatprep.mubr.bf16.mxu0 0
  %806 = vmatmul.mubr.bf16.gmra.mxu0 %v612
  %v807 = vpop.f32.mrf.mxu0
  %v808 = vadd.f32 %v636, %v807
  %v809 = vpop.f32.mrf.mxu0
  %v810 = vpop.f32.mrf.mxu0
  %v811 = vadd.f32 %v636, %v810
  %v812 = vpop.f32.mrf.mxu0
  %813 = vmatprep.mubr.bf16.mxu0 0
  %814 = vmatmul.mubr.bf16.gmra.mxu0 %v613
  %v815 = vpop.f32.mrf.mxu0
  %v816 = vadd.f32 %v636, %v815
  %v817 = vpop.f32.mrf.mxu0
  %v818 = vpop.f32.mrf.mxu0
  %v819 = vadd.f32 %v636, %v818
  %v820 = vpop.f32.mrf.mxu0
  %821 = vmatprep.mubr.bf16.mxu0 0
  %822 = vmatmul.mubr.bf16.gmra.mxu0 %v614
  %v823 = vpop.f32.mrf.mxu0
  %v824 = vadd.f32 %v636, %v823
  %v825 = vpop.f32.mrf.mxu0
  %v826 = vpop.f32.mrf.mxu0
  %v827 = vadd.f32 %v636, %v826
  %v828 = vpop.f32.mrf.mxu0
  %829 = vmatprep.mubr.bf16.mxu0 0
  %830 = vmatmul.mubr.bf16.gmra.mxu0 %v615
  %v831 = vpop.f32.mrf.mxu0
  %v832 = vadd.f32 %v636, %v831
  %v833 = vpop.f32.mrf.mxu0
  %v834 = vpop.f32.mrf.mxu0
  %v835 = vadd.f32 %v636, %v834
  %v836 = vpop.f32.mrf.mxu0
  %837 = vmatprep.mubr.bf16.mxu0 0
  %838 = vmatmul.mubr.bf16.gmra.mxu0 %v616
  %v839 = vpop.f32.mrf.mxu0
  %v840 = vadd.f32 %v636, %v839
  %v841 = vpop.f32.mrf.mxu0
  %v842 = vpop.f32.mrf.mxu0
  %v843 = vadd.f32 %v636, %v842
  %v844 = vpop.f32.mrf.mxu0
  %845 = vdwg.mxu0
  %vm846 = vcmask 64512
  %847 = vst.msk [vmem:[%s5] sm:$0xff] %vm846, %v720
  %848 = vst.msk [vmem:[%s5 + $0x8] sm:$0xff] %vm846, %v723
  %849 = vst.msk [vmem:[%s5 + $0x10] sm:$0xff] %vm846, %v728
  %850 = vst.msk [vmem:[%s5 + $0x18] sm:$0xff] %vm846, %v731
  %851 = vst.msk [vmem:[%s5 + $0x20] sm:$0xff] %vm846, %v736
  %852 = vst.msk [vmem:[%s5 + $0x28] sm:$0xff] %vm846, %v739
  %853 = vst.msk [vmem:[%s5 + $0x30] sm:$0xff] %vm846, %v744
  %854 = vst.msk [vmem:[%s5 + $0x38] sm:$0xff] %vm846, %v747
  %855 = vst.msk [vmem:[%s5 + $0x40] sm:$0xff] %vm846, %v752
  %856 = vst.msk [vmem:[%s5 + $0x48] sm:$0xff] %vm846, %v755
  %857 = vst.msk [vmem:[%s5 + $0x50] sm:$0xff] %vm846, %v760
  %858 = vst.msk [vmem:[%s5 + $0x58] sm:$0xff] %vm846, %v763
  %859 = vst.msk [vmem:[%s5 + $0x60] sm:$0xff] %vm846, %v768
  %860 = vst.msk [vmem:[%s5 + $0x68] sm:$0xff] %vm846, %v771
  %861 = vst.msk [vmem:[%s5 + $0x70] sm:$0xff] %vm846, %v776
  %862 = vst.msk [vmem:[%s5 + $0x78] sm:$0xff] %vm846, %v779
  %863 = vst.msk [vmem:[%s5 + $0x80] sm:$0xff] %vm846, %v784
  %864 = vst.msk [vmem:[%s5 + $0x88] sm:$0xff] %vm846, %v787
  %865 = vst.msk [vmem:[%s5 + $0x90] sm:$0xff] %vm846, %v792
  %866 = vst.msk [vmem:[%s5 + $0x98] sm:$0xff] %vm846, %v795
  %867 = vst.msk [vmem:[%s5 + $0xa0] sm:$0xff] %vm846, %v800
  %868 = vst.msk [vmem:[%s5 + $0xa8] sm:$0xff] %vm846, %v803
  %869 = vst.msk [vmem:[%s5 + $0xb0] sm:$0xff] %vm846, %v808
  %870 = vst.msk [vmem:[%s5 + $0xb8] sm:$0xff] %vm846, %v811
  %871 = vst.msk [vmem:[%s5 + $0xc0] sm:$0xff] %vm846, %v816
  %872 = vst.msk [vmem:[%s5 + $0xc8] sm:$0xff] %vm846, %v819
  %873 = vst.msk [vmem:[%s5 + $0xd0] sm:$0xff] %vm846, %v824
  %874 = vst.msk [vmem:[%s5 + $0xd8] sm:$0xff] %vm846, %v827
  %875 = vst.msk [vmem:[%s5 + $0xe0] sm:$0xff] %vm846, %v832
  %876 = vst.msk [vmem:[%s5 + $0xe8] sm:$0xff] %vm846, %v835
  %877 = vst.msk [vmem:[%s5 + $0xf0] sm:$0xff] %vm846, %v840
  %878 = vst.msk [vmem:[%s5 + $0xf8] sm:$0xff] %vm846, %v843
  // Predicated region
  $region22: #{tpu_custom_call.1} parent=0 // pred_check
    _
  $region23: #{tpu_custom_call.1} parent=0 // pred_check_branch
    %880 = sbr.rel (0) target = $region25
  $region24: #{tpu_custom_call.1} parent=0 // pred_region
    _
  $region25: #{tpu_custom_call.1} parent=0 // pred_fallthru
    _
  // Predicated region
  $region26: #{tpu_custom_call.1} parent=0 // pred_check
    _
  $region27: #{tpu_custom_call.1} parent=0 // pred_check_branch
    %882 = sbr.rel (0) target = $region29
  $region28: #{tpu_custom_call.1} parent=0 // pred_region
    _
  $region29: #{tpu_custom_call.1} parent=0 // pred_fallthru
    _

</llo_original>
